<compile_context>
chip_gen: v6e
topology: v6e:2x2x1
jax: 0.10.0
libtpu: 0.0.40
codegen_flags: <defaults>
</compile_context>

<pallas_src>
import jax
import jax.numpy as jnp
from jax.experimental import pallas as pl
from jax.experimental.pallas import tpu as pltpu

_LANE = 128
_SUBLANE = 8


def _round_up(v, m):
    return (v + m - 1) // m * m


def _head_kernel(x_ref, w1_ref, w2_ref, b1_ref, b2_ref, o_ref):
    # x_ref : [tb, Hp]        f32 (raw activations; cast to bf16 here)
    # w1_ref: [Hp, Ha_pad]    bf16 (padded cols are zero)
    # w2_ref: [Ha_pad, C_pad] bf16 (padded rows/cols are zero)
    # b1_ref: [1, Ha_pad]     f32
    # b2_ref: [1, C_pad]      f32
    # o_ref : [tb, C_pad]     out dtype (lane-dense, unmasked stores)
    # TODO(synk): Dropout is identity in eval mode; training-mode RNG masking
    # (pltpu.prng_random_bits / stateful_bernoulli) not implemented here.
    x = x_ref[...].astype(w1_ref.dtype)
    h = jnp.dot(x, w1_ref[...], preferred_element_type=jnp.float32)
    h = jnp.tanh(h + b1_ref[...])                 # f32 bias add + tanh (v5e-safe)
    out = jnp.dot(h.astype(w2_ref.dtype), w2_ref[...],
                  preferred_element_type=jnp.float32)
    out = out + b2_ref[...]                       # f32 bias add
    o_ref[...] = out.astype(o_ref.dtype)


def prepare_head_params(w1, b1, w2, b2, *, compute_dtype=jnp.bfloat16):
    """One-time (init-path) weight/bias preparation.

    w1: [Hp, Ha], b1: [Ha], w2: [Ha, C], b2: [C]  (weights stored
    [in_features, out_features], i.e. transposed from PyTorch's [out, in]).
    Pads the hidden and class dims to the 128-lane width and casts weights to
    the MXU compute dtype; biases stay f32.
    """
    Hp, Ha = w1.shape
    C = w2.shape[1]
    b1 = b1.reshape(-1)
    b2 = b2.reshape(-1)
    assert b1.shape == (Ha,) and w2.shape == (Ha, C) and b2.shape == (C,)

    ha_pad = _round_up(Ha, _LANE)
    c_pad = _round_up(C, _LANE)

    w1_p = jnp.zeros((Hp, ha_pad), compute_dtype).at[:, :Ha].set(
        w1.astype(compute_dtype))
    w2_p = jnp.zeros((ha_pad, c_pad), compute_dtype).at[:Ha, :C].set(
        w2.astype(compute_dtype))
    b1_p = jnp.zeros((1, ha_pad), jnp.float32).at[0, :Ha].set(
        b1.astype(jnp.float32))
    b2_p = jnp.zeros((1, c_pad), jnp.float32).at[0, :C].set(
        b2.astype(jnp.float32))

    return dict(w1=w1_p, w2=w2_p, b1=b1_p, b2=b2_p, dims=(Hp, Ha, C))


def _choose_tb(B, tb_max):
    """Batch tile: big enough to beat the ~0.35 us per-step pipeline overhead,
    but keep >= 2 tiles when B is large so the 'parallel' axis can shard
    across the 2 TensorCores on v7x."""
    if B <= _SUBLANE:
        return B                                  # full-array block (legal)
    if B <= tb_max:
        if B > 2 * _SUBLANE:
            return max(_SUBLANE, _round_up(pl.cdiv(B, 2), _SUBLANE))
        return _round_up(B, _SUBLANE)
    return tb_max


def classification_head(x, params, *, tb_max=1024, out_dtype=None):
    """x: [B, Hp] float32.  params: from prepare_head_params().
    Returns logits [B, C]."""
    Hp, Ha, C = params["dims"]
    B = x.shape[0]
    assert x.shape[1] == Hp
    w1, w2, b1, b2 = params["w1"], params["w2"], params["b1"], params["b2"]
    ha_pad = w1.shape[1]
    c_pad = w2.shape[1]
    out_dtype = x.dtype if out_dtype is None else out_dtype

    tb = _choose_tb(B, tb_max)
    nb = pl.cdiv(B, tb)

    out = pl.pallas_call(
        _head_kernel,
        out_shape=jax.ShapeDtypeStruct((B, c_pad), out_dtype),
        grid=(nb,),
        in_specs=[
            pl.BlockSpec((tb, Hp), lambda i: (i, 0)),        # raw f32 x
            pl.BlockSpec((Hp, ha_pad), lambda i: (0, 0)),    # VMEM-resident
            pl.BlockSpec((ha_pad, c_pad), lambda i: (0, 0)),  # VMEM-resident
            pl.BlockSpec((1, ha_pad), lambda i: (0, 0)),     # f32 b1
            pl.BlockSpec((1, c_pad), lambda i: (0, 0)),      # f32 b2
        ],
        out_specs=pl.BlockSpec((tb, c_pad), lambda i: (i, 0)),
        compiler_params=pltpu.CompilerParams(
            dimension_semantics=("parallel",),
        ),
    )(x, w1, w2, b1, b2)

    return out[:, :C]


def _reference(x, w1, b1, w2, b2):
    h = jnp.tanh(x @ w1 + b1.reshape(1, -1))
    return h @ w2 + b2.reshape(1, -1)


if __name__ == "__main__":
    # Module hyper-params (small, consistent with the PyTorch __init__).
    numberOfClasses = 4
    hidden_size_att = 32
    hidden_size_post_feats = 64
    batch = 8

    key = jax.random.PRNGKey(0)
    kx, kw1, kb1, kw2, kb2 = jax.random.split(key, 5)

    x = jax.random.normal(kx, (batch, hidden_size_post_feats), dtype=jnp.float32)
    # Deterministic parameter init (synthetic, not a checkpoint load).
    w1 = jax.random.normal(kw1, (hidden_size_post_feats, hidden_size_att),
                           dtype=jnp.float32) * 0.05
    b1 = jax.random.normal(kb1, (hidden_size_att,), dtype=jnp.float32) * 0.01
    w2 = jax.random.normal(kw2, (hidden_size_att, numberOfClasses),
                           dtype=jnp.float32) * 0.05
    b2 = jax.random.normal(kb2, (numberOfClasses,), dtype=jnp.float32) * 0.01

    # One-time weight prep (init path), then a jitted per-call forward.
    params = jax.tree_util.tree_map(jax.block_until_ready,
                                    prepare_head_params(w1, b1, w2, b2))
    fwd = jax.jit(lambda xx: classification_head(xx, params))

    out = jax.block_until_ready(fwd(x))

    ref = _reference(x, w1, b1, w2, b2)
    assert out.shape == (batch, numberOfClasses)
    # bf16 MXU operands (f32 accumulation, f32 bias adds) -> loosened tolerance.
    assert jnp.allclose(out, ref, atol=2e-2, rtol=2e-2), (
        float(jnp.max(jnp.abs(out - ref))))

    print("KERNEL_OK")
</pallas_src>

<mosaic_0001>
module attributes {stable_mosaic.version = 11 : i64} {
  func.func @_head_kernel(%arg0: i32, %arg1: memref<8x64xf32, #tpu.memory_space<vmem>>, %arg2: memref<64x128xbf16, #tpu.memory_space<vmem>>, %arg3: memref<128x128xbf16, #tpu.memory_space<vmem>>, %arg4: memref<1x128xf32, #tpu.memory_space<vmem>>, %arg5: memref<1x128xf32, #tpu.memory_space<vmem>>, %arg6: memref<8x128xf32, #tpu.memory_space<vmem>>) attributes {dimension_semantics = [#tpu.dimension_semantics<parallel>], iteration_bounds = array<i64: 1>, scalar_prefetch = 0 : i64, scratch_operands = 0 : i64, tpu.core_type = #tpu.core_type<tc>, window_params = [{transform_indices = @transform_0, window_bounds = array<i64: 8, 64>}, {pipeline_mode = #tpu.pipeline_mode<synchronous>, transform_indices = @transform_1, window_bounds = array<i64: 64, 128>}, {pipeline_mode = #tpu.pipeline_mode<synchronous>, transform_indices = @transform_2, window_bounds = array<i64: 128, 128>}, {pipeline_mode = #tpu.pipeline_mode<synchronous>, transform_indices = @transform_3, window_bounds = array<i64: 1, 128>}, {pipeline_mode = #tpu.pipeline_mode<synchronous>, transform_indices = @transform_4, window_bounds = array<i64: 1, 128>}, {transform_indices = @transform_5, window_bounds = array<i64: 8, 128>}]} {
    %c0 = arith.constant 0 : index
    %c0_0 = arith.constant 0 : index
    %0 = vector.load %arg1[%c0, %c0_0] : memref<8x64xf32, #tpu.memory_space<vmem>>, vector<8x64xf32>
    %1 = arith.truncf %0 : vector<8x64xf32> to vector<8x64xbf16>
    %c0_1 = arith.constant 0 : index
    %c0_2 = arith.constant 0 : index
    %2 = vector.load %arg2[%c0_1, %c0_2] : memref<64x128xbf16, #tpu.memory_space<vmem>>, vector<64x128xbf16>
    %cst = arith.constant dense<0.000000e+00> : vector<8x128xf32>
    %3 = tpu.matmul %1, %2, %cst {dimension_numbers = #tpu.dot_dimension_numbers<[1], [0], [0], [1], [0, 0, 1, 1], [], []>} : vector<8x64xbf16>, vector<64x128xbf16>, vector<8x128xf32> -> vector<8x128xf32>
    %c0_3 = arith.constant 0 : index
    %c0_4 = arith.constant 0 : index
    %4 = vector.load %arg4[%c0_3, %c0_4] : memref<1x128xf32, #tpu.memory_space<vmem>>, vector<1x128xf32>
    %5 = vector.broadcast %4 : vector<1x128xf32> to vector<8x128xf32>
    %6 = arith.addf %3, %5 : vector<8x128xf32>
    %7 = math.tanh %6 : vector<8x128xf32>
    %8 = arith.truncf %7 : vector<8x128xf32> to vector<8x128xbf16>
    %c0_5 = arith.constant 0 : index
    %c0_6 = arith.constant 0 : index
    %9 = vector.load %arg3[%c0_5, %c0_6] : memref<128x128xbf16, #tpu.memory_space<vmem>>, vector<128x128xbf16>
    %cst_7 = arith.constant dense<0.000000e+00> : vector<8x128xf32>
    %10 = tpu.matmul %8, %9, %cst_7 {dimension_numbers = #tpu.dot_dimension_numbers<[1], [0], [0], [1], [0, 0, 1, 1], [], []>} : vector<8x128xbf16>, vector<128x128xbf16>, vector<8x128xf32> -> vector<8x128xf32>
    %c0_8 = arith.constant 0 : index
    %c0_9 = arith.constant 0 : index
    %11 = vector.load %arg5[%c0_8, %c0_9] : memref<1x128xf32, #tpu.memory_space<vmem>>, vector<1x128xf32>
    %12 = vector.broadcast %11 : vector<1x128xf32> to vector<8x128xf32>
    %13 = arith.addf %10, %12 : vector<8x128xf32>
    %c0_10 = arith.constant 0 : index
    %c0_11 = arith.constant 0 : index
    %14 = vector.load %arg6[%c0_10, %c0_11] : memref<8x128xf32, #tpu.memory_space<vmem>>, vector<8x128xf32>
    tpu.vector_store %arg6[%c0_10, %c0_11], %13 {strides = array<i32>} : memref<8x128xf32, #tpu.memory_space<vmem>>, vector<8x128xf32>,
    return
  }
  func.func @transform_0(%arg0: i32) -> (i32, i32) {
    %c0_i32 = arith.constant 0 : i32
    %c0_i32_0 = arith.constant 0 : i32
    return %arg0, %c0_i32 : i32, i32
  }
  func.func @transform_1(%arg0: i32) -> (i32, i32) {
    %c0_i32 = arith.constant 0 : i32
    %c0_i32_0 = arith.constant 0 : i32
    %c0_i32_1 = arith.constant 0 : i32
    return %c0_i32, %c0_i32_0 : i32, i32
  }
  func.func @transform_2(%arg0: i32) -> (i32, i32) {
    %c0_i32 = arith.constant 0 : i32
    %c0_i32_0 = arith.constant 0 : i32
    %c0_i32_1 = arith.constant 0 : i32
    return %c0_i32, %c0_i32_0 : i32, i32
  }
  func.func @transform_3(%arg0: i32) -> (i32, i32) {
    %c0_i32 = arith.constant 0 : i32
    %c0_i32_0 = arith.constant 0 : i32
    %c0_i32_1 = arith.constant 0 : i32
    return %c0_i32, %c0_i32_0 : i32, i32
  }
  func.func @transform_4(%arg0: i32) -> (i32, i32) {
    %c0_i32 = arith.constant 0 : i32
    %c0_i32_0 = arith.constant 0 : i32
    %c0_i32_1 = arith.constant 0 : i32
    return %c0_i32, %c0_i32_0 : i32, i32
  }
  func.func @transform_5(%arg0: i32) -> (i32, i32) {
    %c0_i32 = arith.constant 0 : i32
    %c0_i32_0 = arith.constant 0 : i32
    return %arg0, %c0_i32 : i32, i32
  }
}

</mosaic_0001>

<llo_original>
// kernel: _lambda_.1
$region0: #{_lambda_.1}
  #allocation0 [shape = 'u32[]', space=smem, size = 0x4, offset = 0x4, fixed_abs, tag = 'smem constant byte address 0x4 - core index']
  #allocation1 [shape = 'u32[144,128]{1,0:T(1,128)}', space=vmem, size = 0x12000, scoped, tag = 'internal scratch']
  %s0 = inlined_call_operand.hbm [shape: f32[8,64], index: 0, kind: input, shape index: {}]
  %s1 = inlined_call_operand.hbm [shape: bf16[64,128], index: 1, kind: input, shape index: {}]
  %s2 = inlined_call_operand.hbm [shape: bf16[128,128], index: 2, kind: input, shape index: {}]
  %s3 = inlined_call_operand.vmem [shape: f32[1,128], index: 3, kind: input, shape index: {}]
  %s4 = inlined_call_operand.vmem [shape: f32[1,128], index: 4, kind: input, shape index: {}]
  %s5 = inlined_call_operand.vmem [shape: f32[8,128], index: 5, kind: output, shape index: {}]
  %s6 = sld [smem:[#allocation0]]
  $region42: #{_lambda_.1} parent=0
    _
  %s8 = ssub.s32 1, %s6
  %s9 = scalar_select 0, %s8, %s6
  $region1: #{_lambda_.1} parent=0
    #allocation2 [shape = 'u8[4096]{0}', space=vmem, size = 0x1000, scoped, tag = 'input window, operand 0, single buffered']
    #allocation3 [shape = 's32[1]{0}', space=sflag, size = 0x4, scoped, tag = 'scoped memory for _lambda_.1']
    #allocation4 [shape = 'u8[16384]{0}', space=vmem, size = 0x4000, scoped, tag = 'input window, operand 1, single buffered']
    #allocation5 [shape = 's32[1]{0}', space=sflag, size = 0x4, scoped, tag = 'scoped memory for _lambda_.1']
    #allocation6 [shape = 'u8[32768]{0}', space=vmem, size = 0x8000, scoped, tag = 'input window, operand 2, single buffered']
    %10 = vsyncpa [#allocation3], 0
    %11 = vsyncpa [#allocation5], 0
    // Predicated region
    $region2: #{_lambda_.1} parent=1 // pred_check
      _
    $region3: #{_lambda_.1} parent=1 // pred_check_branch
      %13 = sbr.rel (0) target = $region5
    $region4: #{_lambda_.1} parent=1 // pred_region
      %s15 = ssub.s32 128, 128
      %16 = vsyncadd [#allocation3], %s15
      %s18 = sshll.u32 [#allocation2], 4
      %s19 = int_to_ptr.vmem [resolvable:$true] %s18
      %21 = dma.hbm_to_vmem [thread:$0]  %s0, 128, %s19, [#allocation3]
    $region5: #{_lambda_.1} parent=1 // pred_fallthru
      _
    // Predicated region
    $region6: #{_lambda_.1} parent=1 // pred_check
      _
    $region7: #{_lambda_.1} parent=1 // pred_check_branch
      %23 = sbr.rel (0) target = $region9
    $region8: #{_lambda_.1} parent=1 // pred_region
      %s25 = ssub.s32 512, 512
      %26 = vsyncadd [#allocation5], %s25
      %s27 = sshll.u32 [#allocation4], 4
      %s28 = int_to_ptr.vmem [resolvable:$true] %s27
      %33 = dma.hbm_to_vmem [thread:$0]  %s1, 512, %s28, [#allocation5], 64, 64, 4
    $region9: #{_lambda_.1} parent=1 // pred_fallthru
      _
    // Predicated region
    $region10: #{_lambda_.1} parent=1 // pred_check
      _
    $region11: #{_lambda_.1} parent=1 // pred_check_branch
      %35 = sbr.rel (0) target = $region13
    $region12: #{_lambda_.1} parent=1 // pred_region
      %s37 = ssub.s32 1024, 1024
      %38 = vsyncadd [#allocation5], %s37
      %s39 = sshll.u32 [#allocation6], 4
      %s40 = int_to_ptr.vmem [resolvable:$true] %s39
      %45 = dma.hbm_to_vmem [thread:$0]  %s2, 1024, %s40, [#allocation5], 64, 64, 4
    $region13: #{_lambda_.1} parent=1 // pred_fallthru
      _
    // Predicated region
    $region14: #{_lambda_.1} parent=1 // pred_check
      _
    $region15: #{_lambda_.1} parent=1 // pred_check_branch
      %47 = sbr.rel (0) target = $region17
    $region16: #{_lambda_.1} parent=1 // pred_region
      _
    $region17: #{_lambda_.1} parent=1 // pred_fallthru
      _
    // Predicated region
    $region18: #{_lambda_.1} parent=1 // pred_check
      _
    $region19: #{_lambda_.1} parent=1 // pred_check_branch
      %49 = sbr.rel (0) target = $region21
    $region20: #{_lambda_.1} parent=1 // pred_region
      _
    $region21: #{_lambda_.1} parent=1 // pred_fallthru
      _
    // Predicated region
    $region22: #{_lambda_.1} parent=1 // pred_check
      _
    $region23: #{_lambda_.1} parent=1 // pred_check_branch
      %51 = sbr.rel (0) target = $region25
    $region24: #{_lambda_.1} parent=1 // pred_region
      %52 = dma.done [#allocation3], 128
    $region25: #{_lambda_.1} parent=1 // pred_fallthru
      _
    // Predicated region
    $region26: #{_lambda_.1} parent=1 // pred_check
      _
    $region27: #{_lambda_.1} parent=1 // pred_check_branch
      %54 = sbr.rel (0) target = $region29
    $region28: #{_lambda_.1} parent=1 // pred_region
      %55 = dma.done [#allocation5], 512
    $region29: #{_lambda_.1} parent=1 // pred_fallthru
      _
    // Predicated region
    $region30: #{_lambda_.1} parent=1 // pred_check
      _
    $region31: #{_lambda_.1} parent=1 // pred_check_branch
      %57 = sbr.rel (0) target = $region33
    $region32: #{_lambda_.1} parent=1 // pred_region
      %58 = dma.done [#allocation5], 1024
    $region33: #{_lambda_.1} parent=1 // pred_fallthru
      _
    %v60 = vld [vmem:[#allocation2] sm:$0xff]
    %v61 = vpack.c.bf16 %v60, %v60
    %v62 = vld [vmem:[#allocation4] sm:$0xf]
    %v63 = vld [vmem:[#allocation4 + $0x4] sm:$0xf]
    %v64 = vld [vmem:[#allocation4 + $0x8] sm:$0xf]
    %v65 = vld [vmem:[#allocation4 + $0xc] sm:$0xf]
    %v66 = vld [vmem:[#allocation4 + $0x10] sm:$0xf]
    %v67 = vld [vmem:[#allocation4 + $0x14] sm:$0xf]
    %v68 = vld [vmem:[#allocation4 + $0x18] sm:$0xf]
    %v69 = vld [vmem:[#allocation4 + $0x1c] sm:$0xf]
    %v70 = vld [vmem:[%s3] sm:$0x1]
    %v72 = vlaneseq
    %v73 = vshrl.u32 %v72, 7
    %v74 = vsub.s32 0, %v73
    %v75 = vrot.slane %v70, %v74
    %v85 = vunpack.c.l.b16 %v62
    %v86 = vunpack.c.l.b16 %v63
    %v87 = vunpack.c.l.b16 %v64
    %v88 = vunpack.c.l.b16 %v65
    %v89 = vunpack.c.l.b16 %v66
    %v90 = vunpack.c.l.b16 %v67
    %v91 = vunpack.c.l.b16 %v68
    %v92 = vunpack.c.l.b16 %v69
    %v93 = vpack.c.b16 %v86, %v85
    %v94 = vpack.c.b16 %v88, %v87
    %v95 = vpack.c.b16 %v90, %v89
    %v96 = vpack.c.b16 %v92, %v91
    %vm101 = vcmask 523264
    %v103 = vsel %vm101, %v61, 0
    %105 = vmatprep.subr.bf16.mxu0 0
    %106 = vmatpush1.bf16.msra.mxu0 0
    %107 = vmatprep.subr.bf16.mxu0 0
    %108 = vmatpush1.bf16.msra.mxu0 0
    %109 = vmatprep.subr.bf16.mxu0 0
    %110 = vmatpush1.bf16.msra.mxu0 0
    %111 = vmatprep.subr.bf16.mxu0 0
    %112 = vmatpush1.bf16.msra.mxu0 0
    %113 = vmatprep.subr.bf16.mxu0 0
    %114 = vmatpush1.bf16.msra.mxu0 %v96
    %115 = vmatprep.subr.bf16.mxu0 0
    %116 = vmatpush1.bf16.msra.mxu0 %v95
    %117 = vmatprep.subr.bf16.mxu0 0
    %118 = vmatpush1.bf16.msra.mxu0 %v94
    %119 = vmatprep.subr.bf16.mxu0 0
    %120 = vmatpush1.bf16.msra.mxu0 %v93
    %121 = vmatprep.subr.bf16.mxu0 0
    %122 = vmatpush2.bf16.msra.mxu0 0
    %123 = vmatprep.subr.bf16.mxu0 0
    %124 = vmatpush2.bf16.msra.mxu0 0
    %125 = vmatprep.subr.bf16.mxu0 0
    %126 = vmatpush2.bf16.msra.mxu0 0
    %127 = vmatprep.subr.bf16.mxu0 0
    %128 = vmatpush2.bf16.msra.mxu0 0
    %129 = vmatprep.subr.bf16.mxu0 0
    %130 = vmatpush2.bf16.msra.mxu0 0
    %131 = vmatprep.subr.bf16.mxu0 0
    %132 = vmatpush2.bf16.msra.mxu0 0
    %133 = vmatprep.subr.bf16.mxu0 0
    %134 = vmatpush2.bf16.msra.mxu0 0
    %135 = vmatprep.subr.bf16.mxu0 0
    %136 = vmatpush2.bf16.msra.mxu0 0
    %137 = vmatprep.mubr.bf16.mxu0 0
    %138 = vmatmul.mubr.bf16.gmra.mxu0 %v103
    %v139 = vpop.f32.mrf.mxu0
    %v140 = vadd.f32 %v75, %v139
    %v141 = vpop.f32.mrf.mxu0
    %v142 = vpop.f32.mrf.mxu0
    %v143 = vpop.f32.mrf.mxu0
    %144 = vdwg.mxu0
    %v145 = vtanh.pop %v140
    %v146 = vpack.c.bf16 %v145, %v145
    %v147 = vld [vmem:[#allocation6] sm:$0xf]
    %v148 = vld [vmem:[#allocation6 + $0x4] sm:$0xf]
    %v149 = vld [vmem:[#allocation6 + $0x8] sm:$0xf]
    %v150 = vld [vmem:[#allocation6 + $0xc] sm:$0xf]
    %v151 = vld [vmem:[#allocation6 + $0x10] sm:$0xf]
    %v152 = vld [vmem:[#allocation6 + $0x14] sm:$0xf]
    %v153 = vld [vmem:[#allocation6 + $0x18] sm:$0xf]
    %v154 = vld [vmem:[#allocation6 + $0x1c] sm:$0xf]
    %v155 = vld [vmem:[#allocation6 + $0x20] sm:$0xf]
    %v156 = vld [vmem:[#allocation6 + $0x24] sm:$0xf]
    %v157 = vld [vmem:[#allocation6 + $0x28] sm:$0xf]
    %v158 = vld [vmem:[#allocation6 + $0x2c] sm:$0xf]
    %v159 = vld [vmem:[#allocation6 + $0x30] sm:$0xf]
    %v160 = vld [vmem:[#allocation6 + $0x34] sm:$0xf]
    %v161 = vld [vmem:[#allocation6 + $0x38] sm:$0xf]
    %v162 = vld [vmem:[#allocation6 + $0x3c] sm:$0xf]
    %v163 = vld [vmem:[%s4] sm:$0x1]
    %v165 = vlaneseq
    %v166 = vshrl.u32 %v165, 7
    %v167 = vsub.s32 0, %v166
    %v168 = vrot.slane %v163, %v167
    %v186 = vunpack.c.l.b16 %v147
    %v187 = vunpack.c.l.b16 %v148
    %v188 = vunpack.c.l.b16 %v149
    %v189 = vunpack.c.l.b16 %v150
    %v190 = vunpack.c.l.b16 %v151
    %v191 = vunpack.c.l.b16 %v152
    %v192 = vunpack.c.l.b16 %v153
    %v193 = vunpack.c.l.b16 %v154
    %v194 = vunpack.c.l.b16 %v155
    %v195 = vunpack.c.l.b16 %v156
    %v196 = vunpack.c.l.b16 %v157
    %v197 = vunpack.c.l.b16 %v158
    %v198 = vunpack.c.l.b16 %v159
    %v199 = vunpack.c.l.b16 %v160
    %v200 = vunpack.c.l.b16 %v161
    %v201 = vunpack.c.l.b16 %v162
    %v202 = vpack.c.b16 %v187, %v186
    %v203 = vpack.c.b16 %v189, %v188
    %v204 = vpack.c.b16 %v191, %v190
    %v205 = vpack.c.b16 %v193, %v192
    %v206 = vpack.c.b16 %v195, %v194
    %v207 = vpack.c.b16 %v197, %v196
    %v208 = vpack.c.b16 %v199, %v198
    %v209 = vpack.c.b16 %v201, %v200
    %218 = vmatprep.subr.bf16.mxu0 0
    %219 = vmatpush1.bf16.msra.mxu0 %v209
    %220 = vmatprep.subr.bf16.mxu0 0
    %221 = vmatpush1.bf16.msra.mxu0 %v208
    %222 = vmatprep.subr.bf16.mxu0 0
    %223 = vmatpush1.bf16.msra.mxu0 %v207
    %224 = vmatprep.subr.bf16.mxu0 0
    %225 = vmatpush1.bf16.msra.mxu0 %v206
    %226 = vmatprep.subr.bf16.mxu0 0
    %227 = vmatpush1.bf16.msra.mxu0 %v205
    %228 = vmatprep.subr.bf16.mxu0 0
    %229 = vmatpush1.bf16.msra.mxu0 %v204
    %230 = vmatprep.subr.bf16.mxu0 0
    %231 = vmatpush1.bf16.msra.mxu0 %v203
    %232 = vmatprep.subr.bf16.mxu0 0
    %233 = vmatpush1.bf16.msra.mxu0 %v202
    %234 = vmatprep.subr.bf16.mxu0 0
    %235 = vmatpush2.bf16.msra.mxu0 0
    %236 = vmatprep.subr.bf16.mxu0 0
    %237 = vmatpush2.bf16.msra.mxu0 0
    %238 = vmatprep.subr.bf16.mxu0 0
    %239 = vmatpush2.bf16.msra.mxu0 0
    %240 = vmatprep.subr.bf16.mxu0 0
    %241 = vmatpush2.bf16.msra.mxu0 0
    %242 = vmatprep.subr.bf16.mxu0 0
    %243 = vmatpush2.bf16.msra.mxu0 0
    %244 = vmatprep.subr.bf16.mxu0 0
    %245 = vmatpush2.bf16.msra.mxu0 0
    %246 = vmatprep.subr.bf16.mxu0 0
    %247 = vmatpush2.bf16.msra.mxu0 0
    %248 = vmatprep.subr.bf16.mxu0 0
    %249 = vmatpush2.bf16.msra.mxu0 0
    %250 = vmatprep.mubr.bf16.mxu0 0
    %251 = vmatmul.mubr.bf16.gmra.mxu0 %v146
    %v252 = vpop.f32.mrf.mxu0
    %v253 = vadd.f32 %v168, %v252
    %v254 = vpop.f32.mrf.mxu0
    %v255 = vpop.f32.mrf.mxu0
    %v256 = vpop.f32.mrf.mxu0
    %257 = vdwg.mxu0
    %258 = vst [vmem:[%s5] sm:$0xff] %v253
    // Predicated region
    $region34: #{_lambda_.1} parent=1 // pred_check
      _
    $region35: #{_lambda_.1} parent=1 // pred_check_branch
      %260 = sbr.rel (0) target = $region37
    $region36: #{_lambda_.1} parent=1 // pred_region
      _
    $region37: #{_lambda_.1} parent=1 // pred_fallthru
      _
    // Predicated region
    $region38: #{_lambda_.1} parent=1 // pred_check
      _
    $region39: #{_lambda_.1} parent=1 // pred_check_branch
      %262 = sbr.rel (0) target = $region41
    $region40: #{_lambda_.1} parent=1 // pred_region
      _
    $region41: #{_lambda_.1} parent=1 // pred_fallthru
      _
    %263 = vsyncpa [#allocation3], 1
    %264 = vsyncpa [#allocation5], 1

</llo_original>
